<compile_context>
chip_gen: v7x
topology: tpu7x:2x2x1
jax: 0.10.0
libtpu: 0.0.40
codegen_flags: <defaults>
</compile_context>

<pallas_src>
import functools

import jax
import jax.numpy as jnp
from jax.experimental import pallas as pl
from jax.experimental.pallas import tpu as pltpu  # noqa: F401  (TPU backend)

LANE = 128      # vreg lane width  -> feature dims padded to multiples of this
SUBLANE = 8     # vreg sublane     -> batch padded to multiples of this


def _round_up(x, m):
    return (x + m - 1) // m * m


def _mlp_fused_kernel(x_ref, params_ref, o_ref, *, num_layers, p, apply_relu):
    # x_ref:      (pb, p)                 padded activations
    # params_ref: (num_layers, p + 8, p)  rows [0:p] = W_l, row p = bias_l
    # o_ref:      (pb, p)                 padded output
    h = x_ref[...]
    for l in range(num_layers):                       # static unroll
        w = params_ref[l, 0:p, :]                     # (p, p)   weight
        b = params_ref[l, p:p + 1, :]                 # (1, p)   bias, broadcasts
        h = jnp.dot(h, w, preferred_element_type=jnp.float32) + b
        if apply_relu:
            h = jnp.maximum(h, 0.0)                   # ReLU after EVERY Linear
    o_ref[...] = h.astype(o_ref.dtype)


def mlp_forward(x, packed_params, hidden_size, *, activation=True):
    """Fused forward pass: one pallas_call for the entire MLP (2 input DMAs)."""
    batch, in_dim = x.shape
    num_layers = len(hidden_size) - 1
    out_dim = hidden_size[-1]
    p = packed_params.shape[-1]                       # padded feature width
    pb = _round_up(max(batch, SUBLANE), SUBLANE)      # padded batch (sublanes)

    # Pad input to lane/sublane-dense shape (zeros in padded positions).
    xp = jnp.zeros((pb, p), x.dtype).at[:batch, :in_dim].set(x)

    flops = 2 * pb * p * p * num_layers
    bytes_accessed = (xp.size * xp.dtype.itemsize
                      + packed_params.size * packed_params.dtype.itemsize
                      + pb * p * x.dtype.itemsize)

    kernel = functools.partial(
        _mlp_fused_kernel, num_layers=num_layers, p=p, apply_relu=activation
    )
    out_padded = pl.pallas_call(
        kernel,
        out_shape=jax.ShapeDtypeStruct((pb, p), x.dtype),
        in_specs=[
            pl.BlockSpec((pb, p), lambda: (0, 0)),
            pl.BlockSpec((num_layers, p + SUBLANE, p), lambda: (0, 0, 0)),
        ],
        out_specs=pl.BlockSpec((pb, p), lambda: (0, 0)),
        cost_estimate=pl.CostEstimate(
            flops=flops, transcendentals=0, bytes_accessed=bytes_accessed
        ),
    )(xp, packed_params)
    return out_padded[:batch, :out_dim]


def init_mlp_params(key, hidden_size):
    """Deterministic init matching nn.Linear's uniform(-1/sqrt(fan_in), 1/sqrt(fan_in))."""
    params = []
    for i in range(len(hidden_size) - 1):
        fan_in, fan_out = hidden_size[i], hidden_size[i + 1]
        key, kw, kb = jax.random.split(key, 3)
        bound = 1.0 / jnp.sqrt(fan_in)
        w = jax.random.uniform(kw, (fan_in, fan_out), jnp.float32, -bound, bound)
        b = jax.random.uniform(kb, (fan_out,), jnp.float32, -bound, bound)
        params.append((w, b))
    return params


def pack_params(params, hidden_size):
    """Pack all (W, b) into one lane/sublane-dense f32 slab: (L, P+8, P)."""
    p = _round_up(max(hidden_size), LANE)
    num_layers = len(params)
    slab = jnp.zeros((num_layers, p + SUBLANE, p), jnp.float32)
    for l, (w, b) in enumerate(params):
        k, n = w.shape
        slab = slab.at[l, :k, :n].set(w)      # weight rows [0:k]
        slab = slab.at[l, p, :n].set(b)       # bias in row p
    return slab


def mlp_reference(x, params, *, activation=True):
    for (w, b) in params:
        x = x @ w + b
        if activation:
            x = jnp.maximum(x, 0.0)
    return x


# TODO(synk): batchnorm=True and act_fn_name in {'leakyrelu','tanh','sigmoid'} are not exercised
#             by the default module config (relu, batchnorm=False); only that path is implemented.

if __name__ == "__main__":
    hidden_size = [32, 64, 48, 16]   # MLP(hidden_size=[32, 64, 48, 16])
    batch = 8

    key = jax.random.PRNGKey(0)
    key, kx = jax.random.split(key)
    x = jax.random.normal(kx, (batch, hidden_size[0]), jnp.float32)

    params = init_mlp_params(key, hidden_size)
    packed = pack_params(params, hidden_size)

    out = mlp_forward(x, packed, hidden_size, activation=True)
    out = jax.block_until_ready(out)

    ref = mlp_reference(x, params, activation=True)
    assert out.shape == (batch, hidden_size[-1])
    assert jnp.allclose(out, ref, atol=1e-5, rtol=1e-5), "mismatch vs. pure-JAX reference"

    print("KERNEL_OK")
</pallas_src>

<mosaic_0001>
module attributes {stable_mosaic.version = 11 : i64} {
  func.func @_mlp_fused_kernel(%arg0: memref<8x128xf32, #tpu.memory_space<vmem>>, %arg1: memref<3x136x128xf32, #tpu.memory_space<vmem>>, %arg2: memref<8x128xf32, #tpu.memory_space<vmem>>) attributes {dimension_semantics = [], scalar_prefetch = 0 : i64, scratch_operands = 0 : i64, tpu.core_type = #tpu.core_type<tc>} {
    %c0 = arith.constant 0 : index
    %c0_0 = arith.constant 0 : index
    %0 = vector.load %arg0[%c0, %c0_0] : memref<8x128xf32, #tpu.memory_space<vmem>>, vector<8x128xf32>
    %c0_1 = arith.constant 0 : index
    %c0_2 = arith.constant 0 : index
    %c0_3 = arith.constant 0 : index
    %1 = vector.load %arg1[%c0_1, %c0_2, %c0_3] : memref<3x136x128xf32, #tpu.memory_space<vmem>>, vector<1x128x128xf32>
    %2 = vector.shape_cast %1 : vector<1x128x128xf32> to vector<128x128xf32>
    %c0_4 = arith.constant 0 : index
    %c128 = arith.constant 128 : index
    %c0_5 = arith.constant 0 : index
    %3 = vector.load %arg1[%c0_4, %c128, %c0_5] : memref<3x136x128xf32, #tpu.memory_space<vmem>>, vector<1x1x128xf32>
    %4 = vector.shape_cast %3 : vector<1x1x128xf32> to vector<1x128xf32>
    %cst = arith.constant dense<0.000000e+00> : vector<8x128xf32>
    %5 = tpu.matmul %0, %2, %cst {dimension_numbers = #tpu.dot_dimension_numbers<[1], [0], [0], [1], [0, 0, 1, 1], [], []>} : vector<8x128xf32>, vector<128x128xf32>, vector<8x128xf32> -> vector<8x128xf32>
    %6 = vector.broadcast %4 : vector<1x128xf32> to vector<8x128xf32>
    %7 = arith.addf %5, %6 : vector<8x128xf32>
    %cst_6 = arith.constant 0.000000e+00 : f32
    %8 = vector.broadcast %cst_6 : f32 to vector<8x128xf32>
    %9 = arith.maximumf %7, %8 : vector<8x128xf32>
    %c1 = arith.constant 1 : index
    %c0_7 = arith.constant 0 : index
    %c0_8 = arith.constant 0 : index
    %10 = vector.load %arg1[%c1, %c0_7, %c0_8] : memref<3x136x128xf32, #tpu.memory_space<vmem>>, vector<1x128x128xf32>
    %11 = vector.shape_cast %10 : vector<1x128x128xf32> to vector<128x128xf32>
    %c1_9 = arith.constant 1 : index
    %c128_10 = arith.constant 128 : index
    %c0_11 = arith.constant 0 : index
    %12 = vector.load %arg1[%c1_9, %c128_10, %c0_11] : memref<3x136x128xf32, #tpu.memory_space<vmem>>, vector<1x1x128xf32>
    %13 = vector.shape_cast %12 : vector<1x1x128xf32> to vector<1x128xf32>
    %cst_12 = arith.constant dense<0.000000e+00> : vector<8x128xf32>
    %14 = tpu.matmul %9, %11, %cst_12 {dimension_numbers = #tpu.dot_dimension_numbers<[1], [0], [0], [1], [0, 0, 1, 1], [], []>} : vector<8x128xf32>, vector<128x128xf32>, vector<8x128xf32> -> vector<8x128xf32>
    %15 = vector.broadcast %13 : vector<1x128xf32> to vector<8x128xf32>
    %16 = arith.addf %14, %15 : vector<8x128xf32>
    %cst_13 = arith.constant 0.000000e+00 : f32
    %17 = vector.broadcast %cst_13 : f32 to vector<8x128xf32>
    %18 = arith.maximumf %16, %17 : vector<8x128xf32>
    %c2 = arith.constant 2 : index
    %c0_14 = arith.constant 0 : index
    %c0_15 = arith.constant 0 : index
    %19 = vector.load %arg1[%c2, %c0_14, %c0_15] : memref<3x136x128xf32, #tpu.memory_space<vmem>>, vector<1x128x128xf32>
    %20 = vector.shape_cast %19 : vector<1x128x128xf32> to vector<128x128xf32>
    %c2_16 = arith.constant 2 : index
    %c128_17 = arith.constant 128 : index
    %c0_18 = arith.constant 0 : index
    %21 = vector.load %arg1[%c2_16, %c128_17, %c0_18] : memref<3x136x128xf32, #tpu.memory_space<vmem>>, vector<1x1x128xf32>
    %22 = vector.shape_cast %21 : vector<1x1x128xf32> to vector<1x128xf32>
    %cst_19 = arith.constant dense<0.000000e+00> : vector<8x128xf32>
    %23 = tpu.matmul %18, %20, %cst_19 {dimension_numbers = #tpu.dot_dimension_numbers<[1], [0], [0], [1], [0, 0, 1, 1], [], []>} : vector<8x128xf32>, vector<128x128xf32>, vector<8x128xf32> -> vector<8x128xf32>
    %24 = vector.broadcast %22 : vector<1x128xf32> to vector<8x128xf32>
    %25 = arith.addf %23, %24 : vector<8x128xf32>
    %cst_20 = arith.constant 0.000000e+00 : f32
    %26 = vector.broadcast %cst_20 : f32 to vector<8x128xf32>
    %27 = arith.maximumf %25, %26 : vector<8x128xf32>
    %c0_21 = arith.constant 0 : index
    %c0_22 = arith.constant 0 : index
    %28 = vector.load %arg2[%c0_21, %c0_22] : memref<8x128xf32, #tpu.memory_space<vmem>>, vector<8x128xf32>
    tpu.vector_store %arg2[%c0_21, %c0_22], %27 {strides = array<i32>} : memref<8x128xf32, #tpu.memory_space<vmem>>, vector<8x128xf32>,
    return
  }
}

</mosaic_0001>

<llo_original>
// kernel: tpu_custom_call.1
$region0: #{tpu_custom_call.1}
  #allocation0 [shape = 'u32[]', space=smem, size = 0x4, offset = 0x4, fixed_abs, tag = 'smem constant byte address 0x4 - core index']
  #allocation1 [shape = 'u32[144,128]{1,0:T(1,128)}', space=vmem, size = 0x12000, scoped, tag = 'internal scratch']
  %s0 = inlined_call_operand.hbm [shape: f32[8,128], index: 0, kind: input, shape index: {}]
  %s1 = inlined_call_operand.hbm [shape: f32[3,136,128], index: 1, kind: input, shape index: {}]
  %s2 = inlined_call_operand.hbm [shape: f32[8,128], index: 2, kind: output, shape index: {}]
  %s3 = sld [smem:[#allocation0]]
  $region26: #{tpu_custom_call.1} parent=0
    _
  %s5 = ssub.s32 1, %s3
  %s6 = scalar_select 0, %s5, %s3
  $region1: #{tpu_custom_call.1} parent=0
    #allocation2 [shape = 'u8[4096]{0}', space=vmem, size = 0x1000, scoped, tag = 'input window, operand 0, single buffered']
    #allocation3 [shape = 's32[1]{0}', space=sflag, size = 0x4, scoped, tag = 'scoped memory for tpu_custom_call.1']
    #allocation4 [shape = 's32[1]{0}', space=sflag, size = 0x4, scoped, tag = 'scoped memory for tpu_custom_call.1']
    #allocation5 [shape = 'u8[208896]{0}', space=vmem, size = 0x33000, scoped, tag = 'input window, operand 1, single buffered']
    #allocation6 [shape = 's32[1]{0}', space=sflag, size = 0x4, scoped, tag = 'scoped memory for tpu_custom_call.1']
    #allocation7 [shape = 'u8[4096]{0}', space=vmem, size = 0x1000, scoped, tag = 'output window, operand 0, single buffered']
    %7 = vsyncpa [#allocation3], 0
    %8 = vsyncpa [#allocation6], 0
    %9 = vsyncpa [#allocation4], 0
    // Predicated region
    $region2: #{tpu_custom_call.1} parent=1 // pred_check
      _
    $region3: #{tpu_custom_call.1} parent=1 // pred_check_branch
      %11 = sbr.rel (0) target = $region5
    $region4: #{tpu_custom_call.1} parent=1 // pred_region
      %s13 = ssub.s32 128, 128
      %14 = vsyncadd [#allocation3], %s13
      %s16 = sshll.u32 [#allocation2], 4
      %s17 = int_to_ptr.vmem [resolvable:$true] %s16
      %19 = dma.hbm_to_vmem [thread:$0]  %s0, 128, %s17, [#allocation3]
    $region5: #{tpu_custom_call.1} parent=1 // pred_fallthru
      _
    // Predicated region
    $region6: #{tpu_custom_call.1} parent=1 // pred_check
      _
    $region7: #{tpu_custom_call.1} parent=1 // pred_check_branch
      %21 = sbr.rel (0) target = $region9
    $region8: #{tpu_custom_call.1} parent=1 // pred_region
      %s23 = ssub.s32 6528, 6528
      %24 = vsyncadd [#allocation6], %s23
      %s25 = sshll.u32 [#allocation5], 4
      %s26 = int_to_ptr.vmem [resolvable:$true] %s25
      %31 = dma.hbm_to_vmem [thread:$0]  %s1, 6528, %s26, [#allocation6], 128, 128, 8
    $region9: #{tpu_custom_call.1} parent=1 // pred_fallthru
      _
    // Predicated region
    $region10: #{tpu_custom_call.1} parent=1 // pred_check
      _
    $region11: #{tpu_custom_call.1} parent=1 // pred_check_branch
      %33 = sbr.rel (0) target = $region13
    $region12: #{tpu_custom_call.1} parent=1 // pred_region
      %34 = dma.done [#allocation3], 128
    $region13: #{tpu_custom_call.1} parent=1 // pred_fallthru
      _
    // Predicated region
    $region14: #{tpu_custom_call.1} parent=1 // pred_check
      _
    $region15: #{tpu_custom_call.1} parent=1 // pred_check_branch
      %36 = sbr.rel (0) target = $region17
    $region16: #{tpu_custom_call.1} parent=1 // pred_region
      %37 = dma.done [#allocation6], 6528
    $region17: #{tpu_custom_call.1} parent=1 // pred_fallthru
      _
    %v38 = vld [vmem:[#allocation2] sm:$0xff]
    %v39 = vld [vmem:[#allocation5] sm:$0xff]
    %v40 = vld [vmem:[#allocation5 + $0x8] sm:$0xff]
    %v41 = vld [vmem:[#allocation5 + $0x10] sm:$0xff]
    %v42 = vld [vmem:[#allocation5 + $0x18] sm:$0xff]
    %v43 = vld [vmem:[#allocation5 + $0x20] sm:$0xff]
    %v44 = vld [vmem:[#allocation5 + $0x28] sm:$0xff]
    %v45 = vld [vmem:[#allocation5 + $0x30] sm:$0xff]
    %v46 = vld [vmem:[#allocation5 + $0x38] sm:$0xff]
    %v47 = vld [vmem:[#allocation5 + $0x40] sm:$0xff]
    %v48 = vld [vmem:[#allocation5 + $0x48] sm:$0xff]
    %v49 = vld [vmem:[#allocation5 + $0x50] sm:$0xff]
    %v50 = vld [vmem:[#allocation5 + $0x58] sm:$0xff]
    %v51 = vld [vmem:[#allocation5 + $0x60] sm:$0xff]
    %v52 = vld [vmem:[#allocation5 + $0x68] sm:$0xff]
    %v53 = vld [vmem:[#allocation5 + $0x70] sm:$0xff]
    %v54 = vld [vmem:[#allocation5 + $0x78] sm:$0xff]
    %v55 = vld [vmem:[#allocation5 + $0x80] sm:$0x1]
    %v56 = vlaneseq
    %v57 = vshrl.u32 %v56, 7
    %v58 = vsub.s32 0, %v57
    %v59 = vrot.slane %v55, %v58
    %60 = vmatprep.subr.mxu0 0.0
    %61 = vmatpush1.msra.mxu0 %v39
    %62 = vmatprep.subr.mxu0 0.0
    %63 = vmatpush1.msra.mxu0 %v40
    %64 = vmatprep.subr.mxu0 0.0
    %65 = vmatpush1.msra.mxu0 %v41
    %66 = vmatprep.subr.mxu0 0.0
    %67 = vmatpush1.msra.mxu0 %v42
    %68 = vmatprep.subr.mxu0 0.0
    %69 = vmatpush1.msra.mxu0 %v43
    %70 = vmatprep.subr.mxu0 0.0
    %71 = vmatpush1.msra.mxu0 %v44
    %72 = vmatprep.subr.mxu0 0.0
    %73 = vmatpush1.msra.mxu0 %v45
    %74 = vmatprep.subr.mxu0 0.0
    %75 = vmatpush1.msra.mxu0 %v46
    %76 = vmatprep.subr.mxu0 0.0
    %77 = vmatpush1.msra.mxu0 %v47
    %78 = vmatprep.subr.mxu0 0.0
    %79 = vmatpush1.msra.mxu0 %v48
    %80 = vmatprep.subr.mxu0 0.0
    %81 = vmatpush1.msra.mxu0 %v49
    %82 = vmatprep.subr.mxu0 0.0
    %83 = vmatpush1.msra.mxu0 %v50
    %84 = vmatprep.subr.mxu0 0.0
    %85 = vmatpush1.msra.mxu0 %v51
    %86 = vmatprep.subr.mxu0 0.0
    %87 = vmatpush1.msra.mxu0 %v52
    %88 = vmatprep.subr.mxu0 0.0
    %89 = vmatpush1.msra.mxu0 %v53
    %90 = vmatprep.subr.mxu0 0.0
    %91 = vmatpush1.msra.mxu0 %v54
    %92 = vmatprep.subr.mxu0 0.0
    %93 = vmatpush1.msra.mxu0 0.0
    %94 = vmatprep.subr.mxu0 0.0
    %95 = vmatpush1.msra.mxu0 0.0
    %96 = vmatprep.subr.mxu0 0.0
    %97 = vmatpush1.msra.mxu0 0.0
    %98 = vmatprep.subr.mxu0 0.0
    %99 = vmatpush1.msra.mxu0 0.0
    %100 = vmatprep.subr.mxu0 0.0
    %101 = vmatpush1.msra.mxu0 0.0
    %102 = vmatprep.subr.mxu0 0.0
    %103 = vmatpush1.msra.mxu0 0.0
    %104 = vmatprep.subr.mxu0 0.0
    %105 = vmatpush1.msra.mxu0 0.0
    %106 = vmatprep.subr.mxu0 0.0
    %107 = vmatpush1.msra.mxu0 0.0
    %108 = vmatprep.subr.mxu0 0.0
    %109 = vmatpush1.msra.mxu0 0.0
    %110 = vmatprep.subr.mxu0 0.0
    %111 = vmatpush1.msra.mxu0 0.0
    %112 = vmatprep.subr.mxu0 0.0
    %113 = vmatpush1.msra.mxu0 0.0
    %114 = vmatprep.subr.mxu0 0.0
    %115 = vmatpush1.msra.mxu0 0.0
    %116 = vmatprep.subr.mxu0 0.0
    %117 = vmatpush1.msra.mxu0 0.0
    %118 = vmatprep.subr.mxu0 0.0
    %119 = vmatpush1.msra.mxu0 0.0
    %120 = vmatprep.subr.mxu0 0.0
    %121 = vmatpush1.msra.mxu0 0.0
    %122 = vmatprep.subr.mxu0 0.0
    %123 = vmatpush1.msra.mxu0 0.0
    %124 = vmatprep.mubr.f32.mxu0 0.0
    %125 = vmatmul.mubr.f32.gmra.mrb[0].mxu0 %v38
    %v126 = vpop.f32.mrb[0].mxu0
    %v127 = vadd.f32 %v59, %v126
    %v128 = vpop.f32.mrb[0].mxu0
    %129 = vdwg.mxu0
    %v130 = vmax.f32 %v127, 0.0
    %s131 = scalar_lea.vmem [#allocation5], 136
    %v132 = vld [vmem:[%s131] sm:$0xff]
    %v133 = vld [vmem:[%s131 + $0x8] sm:$0xff]
    %v134 = vld [vmem:[%s131 + $0x10] sm:$0xff]
    %v135 = vld [vmem:[%s131 + $0x18] sm:$0xff]
    %v136 = vld [vmem:[%s131 + $0x20] sm:$0xff]
    %v137 = vld [vmem:[%s131 + $0x28] sm:$0xff]
    %v138 = vld [vmem:[%s131 + $0x30] sm:$0xff]
    %v139 = vld [vmem:[%s131 + $0x38] sm:$0xff]
    %v140 = vld [vmem:[%s131 + $0x40] sm:$0xff]
    %v141 = vld [vmem:[%s131 + $0x48] sm:$0xff]
    %v142 = vld [vmem:[%s131 + $0x50] sm:$0xff]
    %v143 = vld [vmem:[%s131 + $0x58] sm:$0xff]
    %v144 = vld [vmem:[%s131 + $0x60] sm:$0xff]
    %v145 = vld [vmem:[%s131 + $0x68] sm:$0xff]
    %v146 = vld [vmem:[%s131 + $0x70] sm:$0xff]
    %v147 = vld [vmem:[%s131 + $0x78] sm:$0xff]
    %v148 = vld [vmem:[%s131 + $0x80] sm:$0x1]
    %v149 = vlaneseq
    %v150 = vshrl.u32 %v149, 7
    %v151 = vsub.s32 0, %v150
    %v152 = vrot.slane %v148, %v151
    %153 = vmatprep.subr.mxu0 0.0
    %154 = vmatpush1.msra.mxu0 %v132
    %155 = vmatprep.subr.mxu0 0.0
    %156 = vmatpush1.msra.mxu0 %v133
    %157 = vmatprep.subr.mxu0 0.0
    %158 = vmatpush1.msra.mxu0 %v134
    %159 = vmatprep.subr.mxu0 0.0
    %160 = vmatpush1.msra.mxu0 %v135
    %161 = vmatprep.subr.mxu0 0.0
    %162 = vmatpush1.msra.mxu0 %v136
    %163 = vmatprep.subr.mxu0 0.0
    %164 = vmatpush1.msra.mxu0 %v137
    %165 = vmatprep.subr.mxu0 0.0
    %166 = vmatpush1.msra.mxu0 %v138
    %167 = vmatprep.subr.mxu0 0.0
    %168 = vmatpush1.msra.mxu0 %v139
    %169 = vmatprep.subr.mxu0 0.0
    %170 = vmatpush1.msra.mxu0 %v140
    %171 = vmatprep.subr.mxu0 0.0
    %172 = vmatpush1.msra.mxu0 %v141
    %173 = vmatprep.subr.mxu0 0.0
    %174 = vmatpush1.msra.mxu0 %v142
    %175 = vmatprep.subr.mxu0 0.0
    %176 = vmatpush1.msra.mxu0 %v143
    %177 = vmatprep.subr.mxu0 0.0
    %178 = vmatpush1.msra.mxu0 %v144
    %179 = vmatprep.subr.mxu0 0.0
    %180 = vmatpush1.msra.mxu0 %v145
    %181 = vmatprep.subr.mxu0 0.0
    %182 = vmatpush1.msra.mxu0 %v146
    %183 = vmatprep.subr.mxu0 0.0
    %184 = vmatpush1.msra.mxu0 %v147
    %185 = vmatprep.subr.mxu0 0.0
    %186 = vmatpush1.msra.mxu0 0.0
    %187 = vmatprep.subr.mxu0 0.0
    %188 = vmatpush1.msra.mxu0 0.0
    %189 = vmatprep.subr.mxu0 0.0
    %190 = vmatpush1.msra.mxu0 0.0
    %191 = vmatprep.subr.mxu0 0.0
    %192 = vmatpush1.msra.mxu0 0.0
    %193 = vmatprep.subr.mxu0 0.0
    %194 = vmatpush1.msra.mxu0 0.0
    %195 = vmatprep.subr.mxu0 0.0
    %196 = vmatpush1.msra.mxu0 0.0
    %197 = vmatprep.subr.mxu0 0.0
    %198 = vmatpush1.msra.mxu0 0.0
    %199 = vmatprep.subr.mxu0 0.0
    %200 = vmatpush1.msra.mxu0 0.0
    %201 = vmatprep.subr.mxu0 0.0
    %202 = vmatpush1.msra.mxu0 0.0
    %203 = vmatprep.subr.mxu0 0.0
    %204 = vmatpush1.msra.mxu0 0.0
    %205 = vmatprep.subr.mxu0 0.0
    %206 = vmatpush1.msra.mxu0 0.0
    %207 = vmatprep.subr.mxu0 0.0
    %208 = vmatpush1.msra.mxu0 0.0
    %209 = vmatprep.subr.mxu0 0.0
    %210 = vmatpush1.msra.mxu0 0.0
    %211 = vmatprep.subr.mxu0 0.0
    %212 = vmatpush1.msra.mxu0 0.0
    %213 = vmatprep.subr.mxu0 0.0
    %214 = vmatpush1.msra.mxu0 0.0
    %215 = vmatprep.subr.mxu0 0.0
    %216 = vmatpush1.msra.mxu0 0.0
    %217 = vmatprep.mubr.f32.mxu0 0.0
    %218 = vmatmul.mubr.f32.gmra.mrb[0].mxu0 %v130
    %v219 = vpop.f32.mrb[0].mxu0
    %v220 = vadd.f32 %v152, %v219
    %v221 = vpop.f32.mrb[0].mxu0
    %222 = vdwg.mxu0
    %v223 = vmax.f32 %v220, 0.0
    %s224 = scalar_lea.vmem [#allocation5], 272
    %v225 = vld [vmem:[%s224] sm:$0xff]
    %v226 = vld [vmem:[%s224 + $0x8] sm:$0xff]
    %v227 = vld [vmem:[%s224 + $0x10] sm:$0xff]
    %v228 = vld [vmem:[%s224 + $0x18] sm:$0xff]
    %v229 = vld [vmem:[%s224 + $0x20] sm:$0xff]
    %v230 = vld [vmem:[%s224 + $0x28] sm:$0xff]
    %v231 = vld [vmem:[%s224 + $0x30] sm:$0xff]
    %v232 = vld [vmem:[%s224 + $0x38] sm:$0xff]
    %v233 = vld [vmem:[%s224 + $0x40] sm:$0xff]
    %v234 = vld [vmem:[%s224 + $0x48] sm:$0xff]
    %v235 = vld [vmem:[%s224 + $0x50] sm:$0xff]
    %v236 = vld [vmem:[%s224 + $0x58] sm:$0xff]
    %v237 = vld [vmem:[%s224 + $0x60] sm:$0xff]
    %v238 = vld [vmem:[%s224 + $0x68] sm:$0xff]
    %v239 = vld [vmem:[%s224 + $0x70] sm:$0xff]
    %v240 = vld [vmem:[%s224 + $0x78] sm:$0xff]
    %v241 = vld [vmem:[%s224 + $0x80] sm:$0x1]
    %v242 = vlaneseq
    %v243 = vshrl.u32 %v242, 7
    %v244 = vsub.s32 0, %v243
    %v245 = vrot.slane %v241, %v244
    %246 = vmatprep.subr.mxu0 0.0
    %247 = vmatpush1.msra.mxu0 %v225
    %248 = vmatprep.subr.mxu0 0.0
    %249 = vmatpush1.msra.mxu0 %v226
    %250 = vmatprep.subr.mxu0 0.0
    %251 = vmatpush1.msra.mxu0 %v227
    %252 = vmatprep.subr.mxu0 0.0
    %253 = vmatpush1.msra.mxu0 %v228
    %254 = vmatprep.subr.mxu0 0.0
    %255 = vmatpush1.msra.mxu0 %v229
    %256 = vmatprep.subr.mxu0 0.0
    %257 = vmatpush1.msra.mxu0 %v230
    %258 = vmatprep.subr.mxu0 0.0
    %259 = vmatpush1.msra.mxu0 %v231
    %260 = vmatprep.subr.mxu0 0.0
    %261 = vmatpush1.msra.mxu0 %v232
    %262 = vmatprep.subr.mxu0 0.0
    %263 = vmatpush1.msra.mxu0 %v233
    %264 = vmatprep.subr.mxu0 0.0
    %265 = vmatpush1.msra.mxu0 %v234
    %266 = vmatprep.subr.mxu0 0.0
    %267 = vmatpush1.msra.mxu0 %v235
    %268 = vmatprep.subr.mxu0 0.0
    %269 = vmatpush1.msra.mxu0 %v236
    %270 = vmatprep.subr.mxu0 0.0
    %271 = vmatpush1.msra.mxu0 %v237
    %272 = vmatprep.subr.mxu0 0.0
    %273 = vmatpush1.msra.mxu0 %v238
    %274 = vmatprep.subr.mxu0 0.0
    %275 = vmatpush1.msra.mxu0 %v239
    %276 = vmatprep.subr.mxu0 0.0
    %277 = vmatpush1.msra.mxu0 %v240
    %278 = vmatprep.subr.mxu0 0.0
    %279 = vmatpush1.msra.mxu0 0.0
    %280 = vmatprep.subr.mxu0 0.0
    %281 = vmatpush1.msra.mxu0 0.0
    %282 = vmatprep.subr.mxu0 0.0
    %283 = vmatpush1.msra.mxu0 0.0
    %284 = vmatprep.subr.mxu0 0.0
    %285 = vmatpush1.msra.mxu0 0.0
    %286 = vmatprep.subr.mxu0 0.0
    %287 = vmatpush1.msra.mxu0 0.0
    %288 = vmatprep.subr.mxu0 0.0
    %289 = vmatpush1.msra.mxu0 0.0
    %290 = vmatprep.subr.mxu0 0.0
    %291 = vmatpush1.msra.mxu0 0.0
    %292 = vmatprep.subr.mxu0 0.0
    %293 = vmatpush1.msra.mxu0 0.0
    %294 = vmatprep.subr.mxu0 0.0
    %295 = vmatpush1.msra.mxu0 0.0
    %296 = vmatprep.subr.mxu0 0.0
    %297 = vmatpush1.msra.mxu0 0.0
    %298 = vmatprep.subr.mxu0 0.0
    %299 = vmatpush1.msra.mxu0 0.0
    %300 = vmatprep.subr.mxu0 0.0
    %301 = vmatpush1.msra.mxu0 0.0
    %302 = vmatprep.subr.mxu0 0.0
    %303 = vmatpush1.msra.mxu0 0.0
    %304 = vmatprep.subr.mxu0 0.0
    %305 = vmatpush1.msra.mxu0 0.0
    %306 = vmatprep.subr.mxu0 0.0
    %307 = vmatpush1.msra.mxu0 0.0
    %308 = vmatprep.subr.mxu0 0.0
    %309 = vmatpush1.msra.mxu0 0.0
    %310 = vmatprep.mubr.f32.mxu0 0.0
    %311 = vmatmul.mubr.f32.gmra.mrb[0].mxu0 %v223
    %v312 = vpop.f32.mrb[0].mxu0
    %v313 = vadd.f32 %v245, %v312
    %v314 = vpop.f32.mrb[0].mxu0
    %315 = vdwg.mxu0
    %v316 = vmax.f32 %v313, 0.0
    %317 = vst [vmem:[#allocation7] sm:$0xff] %v316
    // Predicated region
    $region18: #{tpu_custom_call.1} parent=1 // pred_check
      _
    $region19: #{tpu_custom_call.1} parent=1 // pred_check_branch
      %319 = sbr.rel (0) target = $region21
    $region20: #{tpu_custom_call.1} parent=1 // pred_region
      %s321 = ssub.s32 128, 128
      %322 = vsyncadd [#allocation4], %s321
      %s324 = sshll.u32 [#allocation7], 4
      %s325 = int_to_ptr.vmem [resolvable:$true] %s324
      %327 = dma.vmem_to_hbm [thread:$0]  %s325, 128, %s2, [#allocation4]
    $region21: #{tpu_custom_call.1} parent=1 // pred_fallthru
      _
    // Predicated region
    $region22: #{tpu_custom_call.1} parent=1 // pred_check
      _
    $region23: #{tpu_custom_call.1} parent=1 // pred_check_branch
      %329 = sbr.rel (0) target = $region25
    $region24: #{tpu_custom_call.1} parent=1 // pred_region
      %330 = dma.done [#allocation4], 128
    $region25: #{tpu_custom_call.1} parent=1 // pred_fallthru
      _
    %331 = vsyncpa [#allocation3], 1
    %332 = vsyncpa [#allocation6], 1
    %333 = vsyncpa [#allocation4], 1

</llo_original>
